<compile_context>
chip_gen: v7x
topology: tpu7x:2x2x1
jax: 0.10.0
libtpu: 0.0.40
codegen_flags: <defaults>
</compile_context>

<pallas_src>
import functools

import jax
import jax.numpy as jnp
import numpy as np
from jax.experimental import pallas as pl
from jax.experimental.pallas import tpu as pltpu

_BLOCK_BYTES = 1 << 20  # ~1 MiB per input block (~2 MiB double-buffered)


def _pool_kernel(x_ref, out_ref, mx_acc, sum_acc, *, inv_hw):
    """One (row-block, hw-block) step of the fused global max+avg pool.

    x_ref   : (TR, THW) block of the flattened (N*C, H*W) input, native dtype
    out_ref : (TR, 2)   per-row [max, mean]; written on the final HW step
    mx_acc  : (TR, 1)   f32 running max     (VMEM scratch)
    sum_acc : (TR, 1)   f32 running sum     (VMEM scratch)
    """
    k = pl.program_id(1)

    @pl.when(k == 0)
    def _():
        mx_acc[...] = jnp.full_like(mx_acc, -jnp.inf)
        sum_acc[...] = jnp.zeros_like(sum_acc)

    x = x_ref[...].astype(jnp.float32)  # cast on load; keep accumulation in f32
    mx_acc[...] = jnp.maximum(mx_acc[...], jnp.max(x, axis=-1, keepdims=True))
    sum_acc[...] = sum_acc[...] + jnp.sum(x, axis=-1, keepdims=True)

    @pl.when(k == pl.num_programs(1) - 1)
    def _():
        # Two slice stores; no in-kernel concatenate (no cross-lane shuffles).
        out_ref[:, 0:1] = mx_acc[...].astype(out_ref.dtype)
        out_ref[:, 1:2] = (sum_acc[...] * inv_hw).astype(out_ref.dtype)


def _pick_tiles(num_rows, hw, itemsize):
    """Choose (row_block, hw_block) within the per-block byte budget.

    hw_block is either the full H*W or an exact 128-multiple divisor of it
    (so no lane padding ever contaminates a row's reduction); row_block is a
    multiple of 8 (full sublane occupancy) unless it covers all rows.
    """
    if 8 * hw * itemsize <= _BLOCK_BYTES:
        thw = hw
    else:
        thw = hw  # fallback: no clean divisor -> take the full row
        cand = (_BLOCK_BYTES // (8 * itemsize)) // 128 * 128
        while cand >= 128:
            if hw % cand == 0:
                thw = cand
                break
            cand -= 128
    rows_fit = max(8, (_BLOCK_BYTES // (thw * itemsize)) // 8 * 8)
    tr = num_rows if num_rows <= rows_fit else rows_fit
    return tr, thw


def adaptive_concat_pool2d_pallas(x_nchw):
    """x: (N, C, H, W) -> (N, 2*C, 1, 1); channels [0:C]=max-pool, [C:2C]=avg-pool."""
    N, C, H, W = x_nchw.shape
    HW = H * W
    R = N * C
    x = x_nchw.reshape(R, HW)  # contiguous reshape, native dtype, no wrapper cast

    tr, thw = _pick_tiles(R, HW, x.dtype.itemsize)
    grid = (pl.cdiv(R, tr), pl.cdiv(HW, thw))

    out = pl.pallas_call(
        functools.partial(_pool_kernel, inv_hw=1.0 / HW),
        out_shape=jax.ShapeDtypeStruct((R, 2), x.dtype),
        grid_spec=pltpu.PrefetchScalarGridSpec(
            num_scalar_prefetch=0,
            grid=grid,
            in_specs=[pl.BlockSpec((tr, thw), lambda i, k: (i, k))],
            out_specs=pl.BlockSpec((tr, 2), lambda i, k: (i, 0)),
            scratch_shapes=[pltpu.VMEM((tr, 1), jnp.float32),
                            pltpu.VMEM((tr, 1), jnp.float32)],
        ),
        compiler_params=pltpu.CompilerParams(
            dimension_semantics=("parallel", "arbitrary")),
    )(x)  # (R, 2): col 0 = global max, col 1 = global mean

    # Tiny wrapper-side reshuffle to the PyTorch output layout (N, 2C, 1, 1),
    # with the first C channels = max-pool, last C = avg-pool (torch.cat order).
    out = out.reshape(N, C, 2)
    out = jnp.transpose(out, (0, 2, 1)).reshape(N, 2 * C, 1, 1)
    return out


def adaptive_concat_pool2d_ref(x_nchw):
    """Pure-JAX reference matching the PyTorch module."""
    mx = jnp.max(x_nchw, axis=(2, 3), keepdims=True)
    av = jnp.mean(x_nchw, axis=(2, 3), keepdims=True)
    return jnp.concatenate([mx, av], axis=1)


if __name__ == "__main__":
    # Module config: AdaptiveConcatPool2d(sz=None) -> 1x1 output, 2*C channels.
    N, C, H, W = 2, 4, 16, 16

    key = jax.random.PRNGKey(0)
    x = jax.random.normal(key, (N, C, H, W), dtype=jnp.float32)  # NCHW, like PyTorch

    run = jax.jit(adaptive_concat_pool2d_pallas)
    out = run(x)
    jax.block_until_ready(out)

    ref = adaptive_concat_pool2d_ref(x)
    assert out.shape == (N, 2 * C, 1, 1), out.shape
    np.testing.assert_allclose(np.asarray(out), np.asarray(ref), rtol=1e-5, atol=1e-5)

    print("KERNEL_OK")
</pallas_src>

<mosaic_0001>
module attributes {stable_mosaic.version = 11 : i64} {
  func.func @_pool_kernel(%arg0: i32, %arg1: i32, %arg2: memref<8x256xf32, #tpu.memory_space<vmem>>, %arg3: memref<8x2xf32, #tpu.memory_space<vmem>>, %arg4: memref<8x1xf32, #tpu.memory_space<vmem>>, %arg5: memref<8x1xf32, #tpu.memory_space<vmem>>) attributes {dimension_semantics = [#tpu.dimension_semantics<parallel>, #tpu.dimension_semantics<arbitrary>], iteration_bounds = array<i64: 1, 1>, scalar_prefetch = 0 : i64, scratch_operands = 2 : i64, tpu.core_type = #tpu.core_type<tc>, window_params = [{transform_indices = @transform_0, window_bounds = array<i64: 8, 256>}, {transform_indices = @transform_1, window_bounds = array<i64: 8, 2>}]} {
    %c0_i32 = arith.constant 0 : i32
    %0 = arith.cmpi eq, %arg1, %c0_i32 : i32
    %1 = arith.extui %0 : i1 to i32
    %c0_i32_0 = arith.constant 0 : i32
    %2 = arith.cmpi ne, %1, %c0_i32_0 : i32
    scf.if %2 {
      %cst_13 = arith.constant 0xFF800000 : f32
      %17 = vector.broadcast %cst_13 : f32 to vector<8x1xf32>
      %c0_14 = arith.constant 0 : index
      %c0_15 = arith.constant 0 : index
      %18 = vector.load %arg4[%c0_14, %c0_15] : memref<8x1xf32, #tpu.memory_space<vmem>>, vector<8x1xf32>
      tpu.vector_store %arg4[%c0_14, %c0_15], %17 {strides = array<i32>} : memref<8x1xf32, #tpu.memory_space<vmem>>, vector<8x1xf32>,
      %cst_16 = arith.constant 0.000000e+00 : f32
      %19 = vector.broadcast %cst_16 : f32 to vector<8x1xf32>
      %c0_17 = arith.constant 0 : index
      %c0_18 = arith.constant 0 : index
      %20 = vector.load %arg5[%c0_17, %c0_18] : memref<8x1xf32, #tpu.memory_space<vmem>>, vector<8x1xf32>
      tpu.vector_store %arg5[%c0_17, %c0_18], %19 {strides = array<i32>} : memref<8x1xf32, #tpu.memory_space<vmem>>, vector<8x1xf32>,
    } else {
    }
    %c0 = arith.constant 0 : index
    %c0_1 = arith.constant 0 : index
    %3 = vector.load %arg2[%c0, %c0_1] : memref<8x256xf32, #tpu.memory_space<vmem>>, vector<8x256xf32>
    %c0_2 = arith.constant 0 : index
    %c0_3 = arith.constant 0 : index
    %4 = vector.load %arg4[%c0_2, %c0_3] : memref<8x1xf32, #tpu.memory_space<vmem>>, vector<8x1xf32>
    %cst = arith.constant dense<0xFF800000> : vector<8xf32>
    %5 = vector.multi_reduction <maximumf>, %3, %cst [1] : vector<8x256xf32> to vector<8xf32>
    %6 = vector.shape_cast %5 : vector<8xf32> to vector<8x1xf32>
    %7 = arith.maximumf %4, %6 : vector<8x1xf32>
    %c0_4 = arith.constant 0 : index
    %c0_5 = arith.constant 0 : index
    %8 = vector.load %arg4[%c0_4, %c0_5] : memref<8x1xf32, #tpu.memory_space<vmem>>, vector<8x1xf32>
    tpu.vector_store %arg4[%c0_4, %c0_5], %7 {strides = array<i32>} : memref<8x1xf32, #tpu.memory_space<vmem>>, vector<8x1xf32>,
    %c0_6 = arith.constant 0 : index
    %c0_7 = arith.constant 0 : index
    %9 = vector.load %arg5[%c0_6, %c0_7] : memref<8x1xf32, #tpu.memory_space<vmem>>, vector<8x1xf32>
    %cst_8 = arith.constant dense<0.000000e+00> : vector<8xf32>
    %10 = vector.multi_reduction <add>, %3, %cst_8 [1] : vector<8x256xf32> to vector<8xf32>
    %11 = vector.shape_cast %10 : vector<8xf32> to vector<8x1xf32>
    %12 = arith.addf %9, %11 : vector<8x1xf32>
    %c0_9 = arith.constant 0 : index
    %c0_10 = arith.constant 0 : index
    %13 = vector.load %arg5[%c0_9, %c0_10] : memref<8x1xf32, #tpu.memory_space<vmem>>, vector<8x1xf32>
    tpu.vector_store %arg5[%c0_9, %c0_10], %12 {strides = array<i32>} : memref<8x1xf32, #tpu.memory_space<vmem>>, vector<8x1xf32>,
    %c0_i32_11 = arith.constant 0 : i32
    %14 = arith.cmpi eq, %arg1, %c0_i32_11 : i32
    %15 = arith.extui %14 : i1 to i32
    %c0_i32_12 = arith.constant 0 : i32
    %16 = arith.cmpi ne, %15, %c0_i32_12 : i32
    scf.if %16 {
      %c0_13 = arith.constant 0 : index
      %c0_14 = arith.constant 0 : index
      %17 = vector.load %arg4[%c0_13, %c0_14] : memref<8x1xf32, #tpu.memory_space<vmem>>, vector<8x1xf32>
      %c0_15 = arith.constant 0 : index
      %c0_16 = arith.constant 0 : index
      %18 = vector.load %arg3[%c0_15, %c0_16] : memref<8x2xf32, #tpu.memory_space<vmem>>, vector<8x1xf32>
      tpu.vector_store %arg3[%c0_15, %c0_16], %17 {strides = array<i32>} : memref<8x2xf32, #tpu.memory_space<vmem>>, vector<8x1xf32>,
      %c0_17 = arith.constant 0 : index
      %c0_18 = arith.constant 0 : index
      %19 = vector.load %arg5[%c0_17, %c0_18] : memref<8x1xf32, #tpu.memory_space<vmem>>, vector<8x1xf32>
      %cst_19 = arith.constant 3.906250e-03 : f32
      %20 = vector.broadcast %cst_19 : f32 to vector<8x1xf32>
      %21 = arith.mulf %19, %20 : vector<8x1xf32>
      %c0_20 = arith.constant 0 : index
      %c1 = arith.constant 1 : index
      %22 = vector.load %arg3[%c0_20, %c1] : memref<8x2xf32, #tpu.memory_space<vmem>>, vector<8x1xf32>
      tpu.vector_store %arg3[%c0_20, %c1], %21 {strides = array<i32>} : memref<8x2xf32, #tpu.memory_space<vmem>>, vector<8x1xf32>,
    } else {
    }
    return
  }
  func.func @transform_0(%arg0: i32, %arg1: i32) -> (i32, i32) {
    %c0_i32 = arith.constant 0 : i32
    return %arg0, %arg1 : i32, i32
  }
  func.func @transform_1(%arg0: i32, %arg1: i32) -> (i32, i32) {
    %c0_i32 = arith.constant 0 : i32
    %c0_i32_0 = arith.constant 0 : i32
    return %arg0, %c0_i32 : i32, i32
  }
}

</mosaic_0001>

<llo_original>
// kernel: adaptive_concat_pool2d_pallas.1
$region0: #{adaptive_concat_pool2d_pallas.1}
  #allocation0 [shape = 'u32[]', space=smem, size = 0x4, offset = 0x4, fixed_abs, tag = 'smem constant byte address 0x4 - core index']
  #allocation1 [shape = 'u32[144,128]{1,0:T(1,128)}', space=vmem, size = 0x12000, scoped, tag = 'internal scratch']
  #allocation2 [shape = 'f32[8,1]{1,0:T(8,128)}', space=vmem, size = 0x1000, scoped, tag = 'scratch operand']
  #allocation3 [shape = 'f32[8,1]{1,0:T(8,128)}', space=vmem, size = 0x1000, scoped, tag = 'scratch operand']
  %s0 = inlined_call_operand.vmem [shape: f32[8,256], index: 0, kind: input, shape index: {}]
  %s1 = inlined_call_operand.vmem [shape: f32[8,2], index: 1, kind: output, shape index: {}]
  %s2 = sld [smem:[#allocation0]]
  $region22: #{adaptive_concat_pool2d_pallas.1} parent=0
    _
  %s4 = ssub.s32 1, %s2
  %s5 = scalar_select 0, %s4, %s2
  // Predicated region
  $region2: #{adaptive_concat_pool2d_pallas.1} parent=0 // pred_check
    _
  $region3: #{adaptive_concat_pool2d_pallas.1} parent=0 // pred_check_branch
    %7 = sbr.rel (0) target = $region5
  $region4: #{adaptive_concat_pool2d_pallas.1} parent=0 // pred_region
    _
  $region5: #{adaptive_concat_pool2d_pallas.1} parent=0 // pred_fallthru
    _
  %p8 = scmp.eq.s32.totalorder 0, 0
  // Predicated region
  $region6: #{adaptive_concat_pool2d_pallas.1} parent=0 // pred_check
    %p9 = pneg %p8
  $region7: #{adaptive_concat_pool2d_pallas.1} parent=0 // pred_check_branch
    %11 = sbr.rel (%p9) target = $region9
  $region8: #{adaptive_concat_pool2d_pallas.1} parent=0 // pred_region
    %vm12 = vcmask 7168
    %13 = vst.msk [vmem:[#allocation2] sm:$0xff] %vm12, -inf
    %14 = vst.msk [vmem:[#allocation3] sm:$0xff] %vm12, 0.0
  $region9: #{adaptive_concat_pool2d_pallas.1} parent=0 // pred_fallthru
    _
  %v15 = vld [vmem:[%s0] sm:$0xff]
  %v16 = vld [vmem:[%s0 + $0x8] sm:$0xff]
  %v17 = vld [vmem:[#allocation2] sm:$0xff]
  %v18 = vmax.f32 %v15, %v16
  %19 = vmax.xlane.f32.xlu0 %v18
  %v20 = vpop.xlane.xlu0 %19
  %v21 = vmax.f32 %v17, %v20
  %vm22 = vcmask 7168
  %23 = vst.msk [vmem:[#allocation2] sm:$0xff] %vm22, %v21
  %v24 = vld [vmem:[#allocation3] sm:$0xff]
  %v25 = vadd.f32 %v15, %v16
  %26 = vadd.xlane.f32.xlu0 %v25
  %v27 = vpop.xlane.xlu0 %26
  %v28 = vadd.f32 %v24, %v27
  %29 = vst.msk [vmem:[#allocation3] sm:$0xff] %vm22, %v28
  // Predicated region
  $region10: #{adaptive_concat_pool2d_pallas.1} parent=0 // pred_check
    %p30 = pneg %p8
  $region11: #{adaptive_concat_pool2d_pallas.1} parent=0 // pred_check_branch
    %32 = sbr.rel (%p30) target = $region13
  $region12: #{adaptive_concat_pool2d_pallas.1} parent=0 // pred_region
    %v33 = vld [vmem:[#allocation2] sm:$0xff]
    %34 = vst.msk [vmem:[%s1] sm:$0xff] %vm22, %v33
    %v35 = vld [vmem:[#allocation3] sm:$0xff]
    %v36 = vmul.f32 %v35, 0.00390625
    %38 = vrot.lane.b32.xlu0 %v36, 1
    %v39 = vpop.permute.xlu0 %38
    %vm41 = vcmask 15368
    %42 = vst.msk [vmem:[%s1] sm:$0xff] %vm41, %v39
  $region13: #{adaptive_concat_pool2d_pallas.1} parent=0 // pred_fallthru
    _
  // Predicated region
  $region14: #{adaptive_concat_pool2d_pallas.1} parent=0 // pred_check
    _
  $region15: #{adaptive_concat_pool2d_pallas.1} parent=0 // pred_check_branch
    %44 = sbr.rel (0) target = $region17
  $region16: #{adaptive_concat_pool2d_pallas.1} parent=0 // pred_region
    _
  $region17: #{adaptive_concat_pool2d_pallas.1} parent=0 // pred_fallthru
    _
  // Predicated region
  $region18: #{adaptive_concat_pool2d_pallas.1} parent=0 // pred_check
    _
  $region19: #{adaptive_concat_pool2d_pallas.1} parent=0 // pred_check_branch
    %46 = sbr.rel (0) target = $region21
  $region20: #{adaptive_concat_pool2d_pallas.1} parent=0 // pred_region
    _
  $region21: #{adaptive_concat_pool2d_pallas.1} parent=0 // pred_fallthru
    _

</llo_original>
